<compile_context>
chip_gen: v7x
topology: tpu7x:2x2x1
jax: 0.10.0
libtpu: 0.0.40
codegen_flags: <defaults>
</compile_context>

<pallas_src>
import functools
from typing import NamedTuple

import jax
import jax.numpy as jnp
from jax.experimental import pallas as pl
from jax.experimental.pallas import tpu as pltpu

LANE = 128   # vreg lane width
SUB = 8      # vreg sublane width


def _round_up(v, m):
    return (v + m - 1) // m * m


class LassoNetMeta(NamedTuple):
    dims: tuple          # (d0, d1, ..., dL) logical dims (PyTorch layer widths)
    hidden: tuple        # ((w_row_off, b_row_off, k_rows, n_cols), ...) layers 0..L-2
    last_w: tuple        # (row_off, k_rows) for W_{L-1}^T
    skip: tuple          # (row_off, k_rows) for skip^T
    last_b_off: int      # row offset of b_{L-1}


def pack_lassonet_params(skip_w, weights, biases):
    """Pack all weights / biases into ONE lane-dense (rows, 128k) f32 slab.

    Do this once per parameter update (not per forward call).
    PyTorch nn.Linear layout expected: weight (out, in), bias (out,).
    Zero-padding of unused rows/cols keeps padded activation lanes exactly 0
    through tanh and all dots.
    """
    f32 = jnp.float32
    d_out, d_in = int(skip_w.shape[0]), int(skip_w.shape[1])
    dims = (d_in,) + tuple(int(w.shape[0]) for w in weights)
    L = len(dims) - 1
    assert L >= 2, "LassoNet requires at least 2 Linear layers"
    assert dims[-1] == d_out
    for i, (w, b) in enumerate(zip(weights, biases)):
        assert tuple(w.shape) == (dims[i + 1], dims[i])
        assert tuple(b.shape) == (dims[i + 1],)

    # kernel activation widths: stage 0 = d_in (unpadded x), stages 1..L-1 padded
    PW = [dims[0]] + [_round_up(d, LANE) for d in dims[1:]]
    LW = max(_round_up(d, LANE) for d in dims[1:])       # slab lane width

    parts, hidden = [], []
    row = 0
    for i in range(L - 1):
        k_in = dims[0] if i == 0 else PW[i]               # rows used by the dot
        k_alloc = _round_up(k_in, SUB)
        n = PW[i + 1]
        w_pad = jnp.zeros((k_alloc, LW), f32).at[:dims[i], :dims[i + 1]].set(
            weights[i].T.astype(f32))
        b_pad = jnp.zeros((SUB, LW), f32).at[0, :dims[i + 1]].set(
            biases[i].astype(f32))
        hidden.append((row, row + k_alloc, k_in, n))
        parts += [w_pad, b_pad]
        row += k_alloc + SUB

    # last Linear layer weight (hidden -> out)
    k_last = PW[L - 1]
    w_last = jnp.zeros((k_last, LW), f32).at[:dims[L - 1], :d_out].set(
        weights[L - 1].T.astype(f32))
    last_w = (row, k_last)
    parts.append(w_last)
    row += k_last

    # skip weight (input -> out), no bias
    k_skip_alloc = _round_up(dims[0], SUB)
    w_skip = jnp.zeros((k_skip_alloc, LW), f32).at[:dims[0], :d_out].set(
        skip_w.T.astype(f32))
    skip = (row, dims[0])
    parts.append(w_skip)
    row += k_skip_alloc

    # last bias
    b_last = jnp.zeros((SUB, LW), f32).at[0, :d_out].set(biases[L - 1].astype(f32))
    last_b_off = row
    parts.append(b_last)
    row += SUB

    slab = jnp.concatenate(parts, axis=0)                 # one aligned DMA
    meta = LassoNetMeta(dims=dims, hidden=tuple(hidden), last_w=last_w,
                        skip=skip, last_b_off=last_b_off)
    return slab, meta


def _lassonet_kernel(hidden, last_w, skip_loc, last_b_off, d_out,
                     x_ref, slab_ref, o_ref):
    """hidden: static ((w_off, b_off, k_rows, n_cols), ...) for tanh layers.
    last_w / skip_loc: (row_off, k_rows) for the final Linear / skip weights.
    All slab slices use static (aligned) offsets, which are free."""
    cur = x_ref[...]                                        # (tb, D_in)

    # Hidden layers 0 .. L-2 : tanh(cur @ W_i + b_i)
    for (w_off, b_off, k, n) in hidden:
        w = slab_ref[w_off:w_off + k, :n]                   # (k, n) static slice
        b = slab_ref[b_off:b_off + 1, :n]                   # (1, n)
        cur = jnp.tanh(jnp.dot(cur, w, preferred_element_type=jnp.float32) + b)

    # Final layer + skip as two accumulated dots (no VMEM scratch round-trip):
    #   out = h_last @ W_last.T + x @ skip.T + b_last
    lw_off, lk = last_w
    sw_off, sk = skip_loc
    wl = slab_ref[lw_off:lw_off + lk, :d_out]
    ws = slab_ref[sw_off:sw_off + sk, :d_out]
    bl = slab_ref[last_b_off:last_b_off + 1, :d_out]
    out = jnp.dot(cur, wl, preferred_element_type=jnp.float32)
    # re-read x at its use site (keeps x's live range short at large tb)
    out = out + jnp.dot(x_ref[...], ws, preferred_element_type=jnp.float32)
    out = out + bl
    o_ref[...] = out.astype(o_ref.dtype)


def lassonet_forward(x, slab, meta, *, tb=None):
    """LassoNet forward.  x: (B, D_in);  slab/meta from pack_lassonet_params."""
    B, D_in = x.shape
    dims = meta.dims
    d_out = dims[-1]
    assert D_in == dims[0]
    if x.dtype != jnp.float32:
        x = x.astype(jnp.float32)

    # Batch tile: aim for >= 4 grid steps (v7x megacore + pipeline depth),
    # rows are a multiple of the 8-row sublane, cap to keep vreg/VMEM pressure low.
    if tb is None:
        tb = _round_up(pl.cdiv(B, 4), SUB)
    tb = max(SUB, min(int(tb), 512))
    grid = pl.cdiv(B, tb)

    kernel = functools.partial(_lassonet_kernel, meta.hidden, meta.last_w,
                               meta.skip, meta.last_b_off, d_out)

    # CostEstimate over the work the kernel actually does (padded lane widths,
    # grid*tb rows), so XLA doesn't schedule this call as "free".
    rows = grid * tb
    flops_row = 2 * sum(k * n for (_, _, k, n) in meta.hidden)
    flops_row += 2 * (meta.last_w[1] * d_out + meta.skip[1] * d_out)
    trans_row = sum(n for (_, _, _, n) in meta.hidden)
    bytes_accessed = 4 * (B * D_in + int(slab.size) + B * d_out)

    out = pl.pallas_call(
        kernel,
        out_shape=jax.ShapeDtypeStruct((B, d_out), x.dtype),
        grid_spec=pltpu.PrefetchScalarGridSpec(
            num_scalar_prefetch=0,
            grid=(grid,),
            in_specs=[
                # x tile over batch; last dim == full extent -> contiguous DMA,
                # Mosaic pads K to 128 in-register.
                pl.BlockSpec((tb, D_in), lambda i: (i, 0)),
                # parameter slab: constant index_map -> DMA'd once, resident.
                pl.BlockSpec(slab.shape, lambda i: (0, 0)),
            ],
            # natural-width output; HBM writeback stays dense (full last dim).
            out_specs=pl.BlockSpec((tb, d_out), lambda i: (i, 0)),
        ),
        compiler_params=pltpu.CompilerParams(
            dimension_semantics=("parallel",)),
        cost_estimate=pl.CostEstimate(
            flops=rows * flops_row,
            transcendentals=rows * trans_row,
            bytes_accessed=bytes_accessed),
    )(x, slab)
    return out


def lassonet_reference(x, skip_w, weights, biases):
    """Pure-JAX reference mirroring the PyTorch forward."""
    result = x @ skip_w.T
    cur = x
    n = len(weights)
    for i, (w, b) in enumerate(zip(weights, biases)):
        cur = cur @ w.T + b
        if i != n - 1:
            cur = jnp.tanh(cur)
    return result + cur


if __name__ == "__main__":
    # LassoNet(*dims) with dims = (16, 32, 32, 8): 3 Linear layers + skip.
    # TODO(synk): prox / regularization / input_mask are training-time utilities
    # outside the forward pass and are not implemented here.
    dims = (16, 32, 32, 8)
    batch = 256          # default tb -> 64 rows/tile, 4 grid steps (even)

    key = jax.random.PRNGKey(0)
    keys = jax.random.split(key, 2 * (len(dims) - 1) + 2)

    # Deterministic synthetic parameter init (uniform, roughly Kaiming-scaled),
    # stored in PyTorch nn.Linear layout: weight (out, in), bias (out,).
    weights, biases = [], []
    k_idx = 0
    for i in range(len(dims) - 1):
        fan_in, fan_out = dims[i], dims[i + 1]
        bound = 1.0 / float(fan_in) ** 0.5
        w = jax.random.uniform(keys[k_idx], (fan_out, fan_in),
                               minval=-bound, maxval=bound, dtype=jnp.float32)
        k_idx += 1
        b = jax.random.uniform(keys[k_idx], (fan_out,),
                               minval=-bound, maxval=bound, dtype=jnp.float32)
        k_idx += 1
        weights.append(w)
        biases.append(b)

    skip_bound = 1.0 / float(dims[0]) ** 0.5
    skip_w = jax.random.uniform(keys[k_idx], (dims[-1], dims[0]),
                                minval=-skip_bound, maxval=skip_bound,
                                dtype=jnp.float32)
    k_idx += 1

    x = jax.random.normal(keys[k_idx], (batch, dims[0]), dtype=jnp.float32)

    # Pack parameters ONCE (hoisted out of the per-call path), then forward.
    slab, meta = pack_lassonet_params(skip_w, weights, biases)
    slab = jax.block_until_ready(slab)

    out = lassonet_forward(x, slab, meta)
    out = jax.block_until_ready(out)

    ref = lassonet_reference(x, skip_w, weights, biases)
    assert out.shape == (batch, dims[-1])
    assert jnp.allclose(out, ref, atol=1e-5, rtol=1e-5), "mismatch vs reference"

    print("KERNEL_OK")
</pallas_src>

<mosaic_0001>
module attributes {stable_mosaic.version = 11 : i64} {
  func.func @_lassonet_kernel(%arg0: i32, %arg1: memref<64x16xf32, #tpu.memory_space<vmem>>, %arg2: memref<312x128xf32, #tpu.memory_space<vmem>>, %arg3: memref<64x8xf32, #tpu.memory_space<vmem>>) attributes {dimension_semantics = [#tpu.dimension_semantics<parallel>], iteration_bounds = array<i64: 4>, scalar_prefetch = 0 : i64, scratch_operands = 0 : i64, tpu.core_type = #tpu.core_type<tc>, window_params = [{transform_indices = @transform_0, window_bounds = array<i64: 64, 16>}, {pipeline_mode = #tpu.pipeline_mode<synchronous>, transform_indices = @transform_1, window_bounds = array<i64: 312, 128>}, {transform_indices = @transform_2, window_bounds = array<i64: 64, 8>}]} {
    %c0 = arith.constant 0 : index
    %c0_0 = arith.constant 0 : index
    %0 = vector.load %arg1[%c0, %c0_0] : memref<64x16xf32, #tpu.memory_space<vmem>>, vector<64x16xf32>
    %c0_1 = arith.constant 0 : index
    %c0_2 = arith.constant 0 : index
    %1 = vector.load %arg2[%c0_1, %c0_2] : memref<312x128xf32, #tpu.memory_space<vmem>>, vector<16x128xf32>
    %c16 = arith.constant 16 : index
    %c0_3 = arith.constant 0 : index
    %2 = vector.load %arg2[%c16, %c0_3] : memref<312x128xf32, #tpu.memory_space<vmem>>, vector<1x128xf32>
    %cst = arith.constant dense<0.000000e+00> : vector<64x128xf32>
    %3 = tpu.matmul %0, %1, %cst {dimension_numbers = #tpu.dot_dimension_numbers<[1], [0], [0], [1], [0, 0, 1, 1], [], []>} : vector<64x16xf32>, vector<16x128xf32>, vector<64x128xf32> -> vector<64x128xf32>
    %4 = vector.broadcast %2 : vector<1x128xf32> to vector<64x128xf32>
    %5 = arith.addf %3, %4 : vector<64x128xf32>
    %6 = math.tanh %5 : vector<64x128xf32>
    %c24 = arith.constant 24 : index
    %c0_4 = arith.constant 0 : index
    %7 = vector.load %arg2[%c24, %c0_4] : memref<312x128xf32, #tpu.memory_space<vmem>>, vector<128x128xf32>
    %c152 = arith.constant 152 : index
    %c0_5 = arith.constant 0 : index
    %8 = vector.load %arg2[%c152, %c0_5] : memref<312x128xf32, #tpu.memory_space<vmem>>, vector<1x128xf32>
    %cst_6 = arith.constant dense<0.000000e+00> : vector<64x128xf32>
    %9 = tpu.matmul %6, %7, %cst_6 {dimension_numbers = #tpu.dot_dimension_numbers<[1], [0], [0], [1], [0, 0, 1, 1], [], []>} : vector<64x128xf32>, vector<128x128xf32>, vector<64x128xf32> -> vector<64x128xf32>
    %10 = vector.broadcast %8 : vector<1x128xf32> to vector<64x128xf32>
    %11 = arith.addf %9, %10 : vector<64x128xf32>
    %12 = math.tanh %11 : vector<64x128xf32>
    %c160 = arith.constant 160 : index
    %c0_7 = arith.constant 0 : index
    %13 = vector.load %arg2[%c160, %c0_7] : memref<312x128xf32, #tpu.memory_space<vmem>>, vector<128x8xf32>
    %c288 = arith.constant 288 : index
    %c0_8 = arith.constant 0 : index
    %14 = vector.load %arg2[%c288, %c0_8] : memref<312x128xf32, #tpu.memory_space<vmem>>, vector<16x8xf32>
    %c304 = arith.constant 304 : index
    %c0_9 = arith.constant 0 : index
    %15 = vector.load %arg2[%c304, %c0_9] : memref<312x128xf32, #tpu.memory_space<vmem>>, vector<1x8xf32>
    %cst_10 = arith.constant dense<0.000000e+00> : vector<64x8xf32>
    %16 = tpu.matmul %12, %13, %cst_10 {dimension_numbers = #tpu.dot_dimension_numbers<[1], [0], [0], [1], [0, 0, 1, 1], [], []>} : vector<64x128xf32>, vector<128x8xf32>, vector<64x8xf32> -> vector<64x8xf32>
    %c0_11 = arith.constant 0 : index
    %c0_12 = arith.constant 0 : index
    %17 = vector.load %arg1[%c0_11, %c0_12] : memref<64x16xf32, #tpu.memory_space<vmem>>, vector<64x16xf32>
    %cst_13 = arith.constant dense<0.000000e+00> : vector<64x8xf32>
    %18 = tpu.matmul %17, %14, %cst_13 {dimension_numbers = #tpu.dot_dimension_numbers<[1], [0], [0], [1], [0, 0, 1, 1], [], []>} : vector<64x16xf32>, vector<16x8xf32>, vector<64x8xf32> -> vector<64x8xf32>
    %19 = arith.addf %16, %18 : vector<64x8xf32>
    %20 = vector.broadcast %15 : vector<1x8xf32> to vector<64x8xf32>
    %21 = arith.addf %19, %20 : vector<64x8xf32>
    %c0_14 = arith.constant 0 : index
    %c0_15 = arith.constant 0 : index
    %22 = vector.load %arg3[%c0_14, %c0_15] : memref<64x8xf32, #tpu.memory_space<vmem>>, vector<64x8xf32>
    tpu.vector_store %arg3[%c0_14, %c0_15], %21 {strides = array<i32>} : memref<64x8xf32, #tpu.memory_space<vmem>>, vector<64x8xf32>,
    return
  }
  func.func @transform_0(%arg0: i32) -> (i32, i32) {
    %c0_i32 = arith.constant 0 : i32
    %c0_i32_0 = arith.constant 0 : i32
    return %arg0, %c0_i32 : i32, i32
  }
  func.func @transform_1(%arg0: i32) -> (i32, i32) {
    %c0_i32 = arith.constant 0 : i32
    %c0_i32_0 = arith.constant 0 : i32
    %c0_i32_1 = arith.constant 0 : i32
    return %c0_i32, %c0_i32_0 : i32, i32
  }
  func.func @transform_2(%arg0: i32) -> (i32, i32) {
    %c0_i32 = arith.constant 0 : i32
    %c0_i32_0 = arith.constant 0 : i32
    return %arg0, %c0_i32 : i32, i32
  }
}

</mosaic_0001>

<llo_original>
// kernel: tpu_custom_call.1
$region0: #{tpu_custom_call.1}
  #allocation0 [shape = 'u32[]', space=smem, size = 0x4, offset = 0x4, fixed_abs, tag = 'smem constant byte address 0x4 - core index']
  #allocation1 [shape = 'u32[144,128]{1,0:T(1,128)}', space=vmem, size = 0x12000, scoped, tag = 'internal scratch']
  %s0 = inlined_call_operand.vmem [shape: f32[256,16], index: 0, kind: input, shape index: {}]
  %s1 = inlined_call_operand.hbm [shape: f32[312,128], index: 1, kind: input, shape index: {}]
  %s2 = inlined_call_operand.vmem [shape: f32[256,8], index: 2, kind: output, shape index: {}]
  %s3 = sld [smem:[#allocation0]]
  $region45: #{tpu_custom_call.1} parent=0
    _
  %s5 = ssub.s32 1, %s3
  %s6 = scalar_select 0, %s5, %s3
  $region1: #{tpu_custom_call.1} parent=0
    #allocation2 [shape = 'u8[159744]{0}', space=vmem, size = 0x27000, scoped, tag = 'input window, operand 1, single buffered']
    #allocation3 [shape = 's32[2]{0}', space=sflag, size = 0x8, scoped, tag = 'scoped memory for tpu_custom_call.1']
    %7 = vsyncpa [#allocation3], 0
    loop: start=0, step=1, limit=6
    $region2: #{tpu_custom_call.1} parent=1 // loop_pre_header
      _
    $region3: #{tpu_custom_call.1} parent=1 // loop_header
      %s9 = sphi 0, %s13
      %p10 = scmp.ge.s32.totalorder %s9, 6
      %s19 = sphi 0, %s21
      %s22 = sphi 0, %s19
      %s23 = sphi 0, %s22
      %s39 = sphi 0, %s23
      %s43 = sphi 0, %s43
      %s45 = sphi 0, %s43
      %s46 = sphi 0, %s45
      %s60 = sphi 0, %s46
      %s66 = sphi 0, %s68
      %s69 = sphi 0, %s66
      %s70 = sphi 0, %s69
      %s86 = sphi 0, %s70
    $region4: #{tpu_custom_call.1} parent=1 // loop_header_branch
      %12 = sbr.rel (%p10) target = $region8
    $region5: #{tpu_custom_call.1} parent=1 // loop_body
      %s14 = ssub.s32 %s9, 1
      %s15 = ssub.s32 %s9, 2
      %s16 = sadd.s32 %s9, 1
      %s17 = ssub.s32 %s9, %s16
      %p18 = scmp.eq.s32.totalorder %s17, 0
      %s20 = sadd.s32 %s19, 1
      %s21 = scalar_select %p18, %s19, %s20
      %p24 = pneg %p18
      %p25 = scmp.eq.s32.totalorder %s9, 3
      %p26 = por %p24, %p25
      %p27 = scmp.ne.s32.totalorder %s19, %s22
      %p28 = scmp.eq.s32.totalorder %s9, 0
      %p29 = por %p27, %p28
      %p30 = scmp.ne.s32.totalorder %s19, %s22
      %p31 = scmp.eq.s32.totalorder %s14, 3
      %p32 = por %p30, %p31
      %p33 = scmp.ne.s32.totalorder %s22, %s23
      %p34 = scmp.eq.s32.totalorder %s14, 0
      %p35 = por %p33, %p34
      %p36 = scmp.ne.s32.totalorder %s22, %s23
      %p37 = scmp.eq.s32.totalorder %s15, 3
      %p38 = por %p36, %p37
      %p40 = scmp.ne.s32.totalorder %s23, %s39
      %p41 = scmp.eq.s32.totalorder %s15, 0
      %p42 = por %p40, %p41
      %s44 = sadd.s32 %s43, 1
      %p47 = scmp.eq.s32.totalorder %s9, 3
      %p48 = scmp.ne.s32.totalorder %s43, %s45
      %p49 = scmp.eq.s32.totalorder %s9, 0
      %p50 = por %p48, %p49
      %p51 = scmp.ne.s32.totalorder %s43, %s45
      %p52 = scmp.eq.s32.totalorder %s14, 3
      %p53 = por %p51, %p52
      %p54 = scmp.ne.s32.totalorder %s45, %s46
      %p55 = scmp.eq.s32.totalorder %s14, 0
      %p56 = por %p54, %p55
      %p57 = scmp.ne.s32.totalorder %s45, %s46
      %p58 = scmp.eq.s32.totalorder %s15, 3
      %p59 = por %p57, %p58
      %p61 = scmp.ne.s32.totalorder %s46, %s60
      %p62 = scmp.eq.s32.totalorder %s15, 0
      %p63 = por %p61, %p62
      %s64 = ssub.s32 %s9, %s16
      %p65 = scmp.eq.s32.totalorder %s64, 0
      %s67 = sadd.s32 %s66, 1
      %s68 = scalar_select %p65, %s66, %s67
      %p71 = pneg %p65
      %p72 = scmp.eq.s32.totalorder %s9, 3
      %p73 = por %p71, %p72
      %p74 = scmp.ne.s32.totalorder %s66, %s69
      %p75 = scmp.eq.s32.totalorder %s9, 0
      %p76 = por %p74, %p75
      %p77 = scmp.ne.s32.totalorder %s66, %s69
      %p78 = scmp.eq.s32.totalorder %s14, 3
      %p79 = por %p77, %p78
      %p80 = scmp.ne.s32.totalorder %s69, %s70
      %p81 = scmp.eq.s32.totalorder %s14, 0
      %p82 = por %p80, %p81
      %p83 = scmp.ne.s32.totalorder %s69, %s70
      %p84 = scmp.eq.s32.totalorder %s15, 3
      %p85 = por %p83, %p84
      %p87 = scmp.ne.s32.totalorder %s70, %s86
      %p88 = scmp.eq.s32.totalorder %s15, 0
      %p89 = por %p87, %p88
      %p90 = scmp.le.s32.totalorder 1, %s9
      %p91 = scmp.lt.s32.totalorder %s9, 5
      %p92 = pnand %p90, %p91
      %p93 = pneg %p92
      // Predicated region
      $region9: #{tpu_custom_call.1} parent=5 // pred_check
        _
      $region10: #{tpu_custom_call.1} parent=5 // pred_check_branch
        %95 = sbr.rel (%p92) target = $region12
      $region11: #{tpu_custom_call.1} parent=5 // pred_region
        %s96 = ssub.s32 %s9, 1
        // Predicated region
        $region13: #{tpu_custom_call.1} parent=11 // pred_check
          %p97 = pneg %p56
        $region14: #{tpu_custom_call.1} parent=11 // pred_check_branch
          %99 = sbr.rel (%p97) target = $region16
        $region15: #{tpu_custom_call.1} parent=11 // pred_region
          %s101 = ssub.s32 4992, 4992
          %102 = vsyncadd [#allocation3], %s101
          %s103 = sshll.u32 [#allocation2], 4
          %s104 = int_to_ptr.vmem [resolvable:$true] %s103
          %109 = dma.hbm_to_vmem [thread:$0]  %s1, 4992, %s104, [#allocation3], 128, 128, 8
        $region16: #{tpu_custom_call.1} parent=11 // pred_fallthru
          _
      $region12: #{tpu_custom_call.1} parent=5 // pred_fallthru
        _
      %p110 = scmp.lt.s32.totalorder %s9, 4
      // Predicated region
      $region17: #{tpu_custom_call.1} parent=5 // pred_check
        %p111 = pneg %p110
      $region18: #{tpu_custom_call.1} parent=5 // pred_check_branch
        %113 = sbr.rel (%p111) target = $region20
      $region19: #{tpu_custom_call.1} parent=5 // pred_region
        // Predicated region
        $region21: #{tpu_custom_call.1} parent=19 // pred_check
          %p114 = pneg %p29
        $region22: #{tpu_custom_call.1} parent=19 // pred_check_branch
          %116 = sbr.rel (%p114) target = $region24
        $region23: #{tpu_custom_call.1} parent=19 // pred_region
          %s117 = smul.u32 8, %s9
          %p118 = scmp.lt.s32.totalorder %s117, 31
          %s119 = scalar_select %p118, %s117, 31
          %s120 = smul.addr %s119, 8
          %s121 = scalar_lea.vmem %s0, %s120
          %s122 = smul.u32 8, %s9
        $region24: #{tpu_custom_call.1} parent=19 // pred_fallthru
          _
      $region20: #{tpu_custom_call.1} parent=5 // pred_fallthru
        _
      %p123 = scmp.le.s32.totalorder 1, %s9
      %p124 = scmp.lt.s32.totalorder %s9, 5
      %p125 = pnand %p123, %p124
      %p126 = pneg %p125
      // Predicated region
      $region25: #{tpu_custom_call.1} parent=5 // pred_check
        _
      $region26: #{tpu_custom_call.1} parent=5 // pred_check_branch
        %128 = sbr.rel (%p125) target = $region28
      $region27: #{tpu_custom_call.1} parent=5 // pred_region
        %s129 = ssub.s32 %s9, 1
        // Predicated region
        $region29: #{tpu_custom_call.1} parent=27 // pred_check
          %p130 = pneg %p56
        $region30: #{tpu_custom_call.1} parent=27 // pred_check_branch
          %132 = sbr.rel (%p130) target = $region32
        $region31: #{tpu_custom_call.1} parent=27 // pred_region
          %133 = dma.done [#allocation3], 4992
        $region32: #{tpu_custom_call.1} parent=27 // pred_fallthru
          _
        %s134 = smul.u32 8, %s14
        %p135 = scmp.lt.s32.totalorder %s134, 31
        %s136 = scalar_select %p135, %s134, 31
        %s137 = smul.addr %s136, 8
        %s138 = scalar_lea.vmem %s0, %s137
        %p139 = pneg %p35
        %p140 = pneg %p32
        %p141 = pneg %p56
        %p142 = pneg %p53
        %p143 = pneg %p82
        %p144 = pneg %p79
        %s145 = smul.u32 8, %s14
        %p146 = scmp.lt.s32.totalorder %s145, 31
        %s147 = scalar_select %p146, %s145, 31
        %s148 = smul.addr %s147, 8
        %s149 = scalar_lea.vmem %s2, %s148
        %s150 = smul.u32 8, %s14
        %p151 = scmp.lt.s32.totalorder %s150, 31
        %s152 = scalar_select %p151, %s150, 31
        %s153 = smul.addr %s152, 8
        %s154 = scalar_lea.vmem %s0, %s153
        %s155 = smul.u32 8, %s14
        %s156 = smul.u32 8, %s14
        %p157 = scmp.lt.s32.totalorder %s156, 31
        %s158 = scalar_select %p157, %s156, 31
        %s159 = smul.addr %s158, 8
        %s160 = scalar_lea.vmem %s2, %s159
        %s161 = smul.u32 8, %s14
        %v162 = vld [vmem:[%s154] sm:$0xff]
        %v163 = vld [vmem:[%s154 + $0x8] sm:$0xff]
        %v164 = vld [vmem:[%s154 + $0x10] sm:$0xff]
        %v165 = vld [vmem:[%s154 + $0x18] sm:$0xff]
        %v166 = vld [vmem:[%s154 + $0x20] sm:$0xff]
        %v167 = vld [vmem:[%s154 + $0x28] sm:$0xff]
        %v168 = vld [vmem:[%s154 + $0x30] sm:$0xff]
        %v169 = vld [vmem:[%s154 + $0x38] sm:$0xff]
        %v170 = vld [vmem:[#allocation2] sm:$0xff]
        %v171 = vld [vmem:[#allocation2 + $0x8] sm:$0xff]
        %v172 = vld [vmem:[#allocation2 + $0x10] sm:$0x1]
        %v173 = vlaneseq
        %v174 = vshrl.u32 %v173, 7
        %v175 = vsub.s32 0, %v174
        %v176 = vrot.slane %v172, %v175
        %vm177 = vcmask 130048
        %v179 = vsel %vm177, %v162, 0
        %v182 = vsel %vm177, %v163, 0
        %v185 = vsel %vm177, %v164, 0
        %v188 = vsel %vm177, %v165, 0
        %v191 = vsel %vm177, %v166, 0
        %v194 = vsel %vm177, %v167, 0
        %v197 = vsel %vm177, %v168, 0
        %v200 = vsel %vm177, %v169, 0
        %202 = vmatprep.subr.mxu0 0.0
        %203 = vmatpush1.msra.mxu0 %v170
        %204 = vmatprep.subr.mxu0 0.0
        %205 = vmatpush1.msra.mxu0 %v171
        %206 = vmatprep.subr.mxu0 0.0
        %207 = vmatpush1.msra.mxu0 0.0
        %208 = vmatprep.subr.mxu0 0.0
        %209 = vmatpush1.msra.mxu0 0.0
        %210 = vmatprep.subr.mxu0 0.0
        %211 = vmatpush1.msra.mxu0 0.0
        %212 = vmatprep.subr.mxu0 0.0
        %213 = vmatpush1.msra.mxu0 0.0
        %214 = vmatprep.subr.mxu0 0.0
        %215 = vmatpush1.msra.mxu0 0.0
        %216 = vmatprep.subr.mxu0 0.0
        %217 = vmatpush1.msra.mxu0 0.0
        %218 = vmatprep.subr.mxu0 0.0
        %219 = vmatpush1.msra.mxu0 0.0
        %220 = vmatprep.subr.mxu0 0.0
        %221 = vmatpush1.msra.mxu0 0.0
        %222 = vmatprep.subr.mxu0 0.0
        %223 = vmatpush1.msra.mxu0 0.0
        %224 = vmatprep.subr.mxu0 0.0
        %225 = vmatpush1.msra.mxu0 0.0
        %226 = vmatprep.subr.mxu0 0.0
        %227 = vmatpush1.msra.mxu0 0.0
        %228 = vmatprep.subr.mxu0 0.0
        %229 = vmatpush1.msra.mxu0 0.0
        %230 = vmatprep.subr.mxu0 0.0
        %231 = vmatpush1.msra.mxu0 0.0
        %232 = vmatprep.subr.mxu0 0.0
        %233 = vmatpush1.msra.mxu0 0.0
        %234 = vmatprep.subr.mxu0 0.0
        %235 = vmatpush1.msra.mxu0 0.0
        %236 = vmatprep.subr.mxu0 0.0
        %237 = vmatpush1.msra.mxu0 0.0
        %238 = vmatprep.subr.mxu0 0.0
        %239 = vmatpush1.msra.mxu0 0.0
        %240 = vmatprep.subr.mxu0 0.0
        %241 = vmatpush1.msra.mxu0 0.0
        %242 = vmatprep.subr.mxu0 0.0
        %243 = vmatpush1.msra.mxu0 0.0
        %244 = vmatprep.subr.mxu0 0.0
        %245 = vmatpush1.msra.mxu0 0.0
        %246 = vmatprep.subr.mxu0 0.0
        %247 = vmatpush1.msra.mxu0 0.0
        %248 = vmatprep.subr.mxu0 0.0
        %249 = vmatpush1.msra.mxu0 0.0
        %250 = vmatprep.subr.mxu0 0.0
        %251 = vmatpush1.msra.mxu0 0.0
        %252 = vmatprep.subr.mxu0 0.0
        %253 = vmatpush1.msra.mxu0 0.0
        %254 = vmatprep.subr.mxu0 0.0
        %255 = vmatpush1.msra.mxu0 0.0
        %256 = vmatprep.subr.mxu0 0.0
        %257 = vmatpush1.msra.mxu0 0.0
        %258 = vmatprep.subr.mxu0 0.0
        %259 = vmatpush1.msra.mxu0 0.0
        %260 = vmatprep.subr.mxu0 0.0
        %261 = vmatpush1.msra.mxu0 0.0
        %262 = vmatprep.subr.mxu0 0.0
        %263 = vmatpush1.msra.mxu0 0.0
        %264 = vmatprep.subr.mxu0 0.0
        %265 = vmatpush1.msra.mxu0 0.0
        %266 = vmatprep.mubr.f32.mxu0 0.0
        %267 = vmatmul.mubr.f32.gmra.mrb[0].mxu0 %v179
        %v268 = vpop.f32.mrb[0].mxu0
        %v269 = vadd.f32 %v176, %v268
        %v270 = vpop.f32.mrb[0].mxu0
        %271 = vmatprep.mubr.f32.mxu0 0.0
        %272 = vmatmul.mubr.f32.gmra.mrb[0].mxu0 %v182
        %v273 = vpop.f32.mrb[0].mxu0
        %v274 = vadd.f32 %v176, %v273
        %v275 = vpop.f32.mrb[0].mxu0
        %276 = vmatprep.mubr.f32.mxu0 0.0
        %277 = vmatmul.mubr.f32.gmra.mrb[0].mxu0 %v185
        %v278 = vpop.f32.mrb[0].mxu0
        %v279 = vadd.f32 %v176, %v278
        %v280 = vpop.f32.mrb[0].mxu0
        %281 = vmatprep.mubr.f32.mxu0 0.0
        %282 = vmatmul.mubr.f32.gmra.mrb[0].mxu0 %v188
        %v283 = vpop.f32.mrb[0].mxu0
        %v284 = vadd.f32 %v176, %v283
        %v285 = vpop.f32.mrb[0].mxu0
        %286 = vmatprep.mubr.f32.mxu0 0.0
        %287 = vmatmul.mubr.f32.gmra.mrb[0].mxu0 %v191
        %v288 = vpop.f32.mrb[0].mxu0
        %v289 = vadd.f32 %v176, %v288
        %v290 = vpop.f32.mrb[0].mxu0
        %291 = vmatprep.mubr.f32.mxu0 0.0
        %292 = vmatmul.mubr.f32.gmra.mrb[0].mxu0 %v194
        %v293 = vpop.f32.mrb[0].mxu0
        %v294 = vadd.f32 %v176, %v293
        %v295 = vpop.f32.mrb[0].mxu0
        %296 = vmatprep.mubr.f32.mxu0 0.0
        %297 = vmatmul.mubr.f32.gmra.mrb[0].mxu0 %v197
        %v298 = vpop.f32.mrb[0].mxu0
        %v299 = vadd.f32 %v176, %v298
        %v300 = vpop.f32.mrb[0].mxu0
        %301 = vmatprep.mubr.f32.mxu0 0.0
        %302 = vmatmul.mubr.f32.gmra.mrb[0].mxu0 %v200
        %v303 = vpop.f32.mrb[0].mxu0
        %v304 = vadd.f32 %v176, %v303
        %v305 = vpop.f32.mrb[0].mxu0
        %306 = vdwg.mxu0
        %v307 = vtanh.pop %v269
        %v308 = vtanh.pop %v274
        %v309 = vtanh.pop %v279
        %v310 = vtanh.pop %v284
        %v311 = vtanh.pop %v289
        %v312 = vtanh.pop %v294
        %v313 = vtanh.pop %v299
        %v314 = vtanh.pop %v304
        %v315 = vld [vmem:[#allocation2 + $0x18] sm:$0xff]
        %v316 = vld [vmem:[#allocation2 + $0x20] sm:$0xff]
        %v317 = vld [vmem:[#allocation2 + $0x28] sm:$0xff]
        %v318 = vld [vmem:[#allocation2 + $0x30] sm:$0xff]
        %v319 = vld [vmem:[#allocation2 + $0x38] sm:$0xff]
        %v320 = vld [vmem:[#allocation2 + $0x40] sm:$0xff]
        %v321 = vld [vmem:[#allocation2 + $0x48] sm:$0xff]
        %v322 = vld [vmem:[#allocation2 + $0x50] sm:$0xff]
        %v323 = vld [vmem:[#allocation2 + $0x58] sm:$0xff]
        %v324 = vld [vmem:[#allocation2 + $0x60] sm:$0xff]
        %v325 = vld [vmem:[#allocation2 + $0x68] sm:$0xff]
        %v326 = vld [vmem:[#allocation2 + $0x70] sm:$0xff]
        %v327 = vld [vmem:[#allocation2 + $0x78] sm:$0xff]
        %v328 = vld [vmem:[#allocation2 + $0x80] sm:$0xff]
        %v329 = vld [vmem:[#allocation2 + $0x88] sm:$0xff]
        %v330 = vld [vmem:[#allocation2 + $0x90] sm:$0xff]
        %v331 = vld [vmem:[#allocation2 + $0x98] sm:$0x1]
        %v332 = vlaneseq
        %v333 = vshrl.u32 %v332, 7
        %v334 = vsub.s32 0, %v333
        %v335 = vrot.slane %v331, %v334
        %336 = vmatprep.subr.mxu0 0.0
        %337 = vmatpush1.msra.mxu0 %v315
        %338 = vmatprep.subr.mxu0 0.0
        %339 = vmatpush1.msra.mxu0 %v316
        %340 = vmatprep.subr.mxu0 0.0
        %341 = vmatpush1.msra.mxu0 %v317
        %342 = vmatprep.subr.mxu0 0.0
        %343 = vmatpush1.msra.mxu0 %v318
        %344 = vmatprep.subr.mxu0 0.0
        %345 = vmatpush1.msra.mxu0 %v319
        %346 = vmatprep.subr.mxu0 0.0
        %347 = vmatpush1.msra.mxu0 %v320
        %348 = vmatprep.subr.mxu0 0.0
        %349 = vmatpush1.msra.mxu0 %v321
        %350 = vmatprep.subr.mxu0 0.0
        %351 = vmatpush1.msra.mxu0 %v322
        %352 = vmatprep.subr.mxu0 0.0
        %353 = vmatpush1.msra.mxu0 %v323
        %354 = vmatprep.subr.mxu0 0.0
        %355 = vmatpush1.msra.mxu0 %v324
        %356 = vmatprep.subr.mxu0 0.0
        %357 = vmatpush1.msra.mxu0 %v325
        %358 = vmatprep.subr.mxu0 0.0
        %359 = vmatpush1.msra.mxu0 %v326
        %360 = vmatprep.subr.mxu0 0.0
        %361 = vmatpush1.msra.mxu0 %v327
        %362 = vmatprep.subr.mxu0 0.0
        %363 = vmatpush1.msra.mxu0 %v328
        %364 = vmatprep.subr.mxu0 0.0
        %365 = vmatpush1.msra.mxu0 %v329
        %366 = vmatprep.subr.mxu0 0.0
        %367 = vmatpush1.msra.mxu0 %v330
        %368 = vmatprep.subr.mxu0 0.0
        %369 = vmatpush1.msra.mxu0 0.0
        %370 = vmatprep.subr.mxu0 0.0
        %371 = vmatpush1.msra.mxu0 0.0
        %372 = vmatprep.subr.mxu0 0.0
        %373 = vmatpush1.msra.mxu0 0.0
        %374 = vmatprep.subr.mxu0 0.0
        %375 = vmatpush1.msra.mxu0 0.0
        %376 = vmatprep.subr.mxu0 0.0
        %377 = vmatpush1.msra.mxu0 0.0
        %378 = vmatprep.subr.mxu0 0.0
        %379 = vmatpush1.msra.mxu0 0.0
        %380 = vmatprep.subr.mxu0 0.0
        %381 = vmatpush1.msra.mxu0 0.0
        %382 = vmatprep.subr.mxu0 0.0
        %383 = vmatpush1.msra.mxu0 0.0
        %384 = vmatprep.subr.mxu0 0.0
        %385 = vmatpush1.msra.mxu0 0.0
        %386 = vmatprep.subr.mxu0 0.0
        %387 = vmatpush1.msra.mxu0 0.0
        %388 = vmatprep.subr.mxu0 0.0
        %389 = vmatpush1.msra.mxu0 0.0
        %390 = vmatprep.subr.mxu0 0.0
        %391 = vmatpush1.msra.mxu0 0.0
        %392 = vmatprep.subr.mxu0 0.0
        %393 = vmatpush1.msra.mxu0 0.0
        %394 = vmatprep.subr.mxu0 0.0
        %395 = vmatpush1.msra.mxu0 0.0
        %396 = vmatprep.subr.mxu0 0.0
        %397 = vmatpush1.msra.mxu0 0.0
        %398 = vmatprep.subr.mxu0 0.0
        %399 = vmatpush1.msra.mxu0 0.0
        %400 = vmatprep.mubr.f32.mxu0 0.0
        %401 = vmatmul.mubr.f32.gmra.mrb[0].mxu0 %v307
        %v402 = vpop.f32.mrb[0].mxu0
        %v403 = vadd.f32 %v335, %v402
        %v404 = vpop.f32.mrb[0].mxu0
        %405 = vmatprep.mubr.f32.mxu0 0.0
        %406 = vmatmul.mubr.f32.gmra.mrb[0].mxu0 %v308
        %v407 = vpop.f32.mrb[0].mxu0
        %v408 = vadd.f32 %v335, %v407
        %v409 = vpop.f32.mrb[0].mxu0
        %410 = vmatprep.mubr.f32.mxu0 0.0
        %411 = vmatmul.mubr.f32.gmra.mrb[0].mxu0 %v309
        %v412 = vpop.f32.mrb[0].mxu0
        %v413 = vadd.f32 %v335, %v412
        %v414 = vpop.f32.mrb[0].mxu0
        %415 = vmatprep.mubr.f32.mxu0 0.0
        %416 = vmatmul.mubr.f32.gmra.mrb[0].mxu0 %v310
        %v417 = vpop.f32.mrb[0].mxu0
        %v418 = vadd.f32 %v335, %v417
        %v419 = vpop.f32.mrb[0].mxu0
        %420 = vmatprep.mubr.f32.mxu0 0.0
        %421 = vmatmul.mubr.f32.gmra.mrb[0].mxu0 %v311
        %v422 = vpop.f32.mrb[0].mxu0
        %v423 = vadd.f32 %v335, %v422
        %v424 = vpop.f32.mrb[0].mxu0
        %425 = vmatprep.mubr.f32.mxu0 0.0
        %426 = vmatmul.mubr.f32.gmra.mrb[0].mxu0 %v312
        %v427 = vpop.f32.mrb[0].mxu0
        %v428 = vadd.f32 %v335, %v427
        %v429 = vpop.f32.mrb[0].mxu0
        %430 = vmatprep.mubr.f32.mxu0 0.0
        %431 = vmatmul.mubr.f32.gmra.mrb[0].mxu0 %v313
        %v432 = vpop.f32.mrb[0].mxu0
        %v433 = vadd.f32 %v335, %v432
        %v434 = vpop.f32.mrb[0].mxu0
        %435 = vmatprep.mubr.f32.mxu0 0.0
        %436 = vmatmul.mubr.f32.gmra.mrb[0].mxu0 %v314
        %v437 = vpop.f32.mrb[0].mxu0
        %v438 = vadd.f32 %v335, %v437
        %v439 = vpop.f32.mrb[0].mxu0
        %440 = vdwg.mxu0
        %v441 = vtanh.pop %v403
        %v442 = vtanh.pop %v408
        %v443 = vtanh.pop %v413
        %v444 = vtanh.pop %v418
        %v445 = vtanh.pop %v423
        %v446 = vtanh.pop %v428
        %v447 = vtanh.pop %v433
        %v448 = vtanh.pop %v438
        %v449 = vld [vmem:[#allocation2 + $0xa0] sm:$0xff]
        %v450 = vld [vmem:[#allocation2 + $0xa8] sm:$0xff]
        %v451 = vld [vmem:[#allocation2 + $0xb0] sm:$0xff]
        %v452 = vld [vmem:[#allocation2 + $0xb8] sm:$0xff]
        %v453 = vld [vmem:[#allocation2 + $0xc0] sm:$0xff]
        %v454 = vld [vmem:[#allocation2 + $0xc8] sm:$0xff]
        %v455 = vld [vmem:[#allocation2 + $0xd0] sm:$0xff]
        %v456 = vld [vmem:[#allocation2 + $0xd8] sm:$0xff]
        %v457 = vld [vmem:[#allocation2 + $0xe0] sm:$0xff]
        %v458 = vld [vmem:[#allocation2 + $0xe8] sm:$0xff]
        %v459 = vld [vmem:[#allocation2 + $0xf0] sm:$0xff]
        %v460 = vld [vmem:[#allocation2 + $0xf8] sm:$0xff]
        %v461 = vld [vmem:[#allocation2 + $0x100] sm:$0xff]
        %v462 = vld [vmem:[#allocation2 + $0x108] sm:$0xff]
        %v463 = vld [vmem:[#allocation2 + $0x110] sm:$0xff]
        %v464 = vld [vmem:[#allocation2 + $0x118] sm:$0xff]
        %v465 = vld [vmem:[#allocation2 + $0x120] sm:$0xff]
        %v466 = vld [vmem:[#allocation2 + $0x128] sm:$0xff]
        %v467 = vld [vmem:[#allocation2 + $0x130] sm:$0x1]
        %468 = vmatprep.subr.mxu0 0.0
        %469 = vmatpush1.msra.mxu0 %v465
        %470 = vmatprep.subr.mxu0 0.0
        %471 = vmatpush1.msra.mxu0 %v466
        %472 = vmatprep.subr.mxu0 0.0
        %473 = vmatpush1.msra.mxu0 0.0
        %474 = vmatprep.subr.mxu0 0.0
        %475 = vmatpush1.msra.mxu0 0.0
        %476 = vmatprep.subr.mxu0 0.0
        %477 = vmatpush1.msra.mxu0 0.0
        %478 = vmatprep.subr.mxu0 0.0
        %479 = vmatpush1.msra.mxu0 0.0
        %480 = vmatprep.subr.mxu0 0.0
        %481 = vmatpush1.msra.mxu0 0.0
        %482 = vmatprep.subr.mxu0 0.0
        %483 = vmatpush1.msra.mxu0 0.0
        %484 = vmatprep.subr.mxu0 0.0
        %485 = vmatpush1.msra.mxu0 0.0
        %486 = vmatprep.subr.mxu0 0.0
        %487 = vmatpush1.msra.mxu0 0.0
        %488 = vmatprep.subr.mxu0 0.0
        %489 = vmatpush1.msra.mxu0 0.0
        %490 = vmatprep.subr.mxu0 0.0
        %491 = vmatpush1.msra.mxu0 0.0
        %492 = vmatprep.subr.mxu0 0.0
        %493 = vmatpush1.msra.mxu0 0.0
        %494 = vmatprep.subr.mxu0 0.0
        %495 = vmatpush1.msra.mxu0 0.0
        %496 = vmatprep.subr.mxu0 0.0
        %497 = vmatpush1.msra.mxu0 0.0
        %498 = vmatprep.subr.mxu0 0.0
        %499 = vmatpush1.msra.mxu0 0.0
        %500 = vmatprep.subr.mxu0 0.0
        %501 = vmatpush1.msra.mxu0 0.0
        %502 = vmatprep.subr.mxu0 0.0
        %503 = vmatpush1.msra.mxu0 0.0
        %504 = vmatprep.subr.mxu0 0.0
        %505 = vmatpush1.msra.mxu0 0.0
        %506 = vmatprep.subr.mxu0 0.0
        %507 = vmatpush1.msra.mxu0 0.0
        %508 = vmatprep.subr.mxu0 0.0
        %509 = vmatpush1.msra.mxu0 0.0
        %510 = vmatprep.subr.mxu0 0.0
        %511 = vmatpush1.msra.mxu0 0.0
        %512 = vmatprep.subr.mxu0 0.0
        %513 = vmatpush1.msra.mxu0 0.0
        %514 = vmatprep.subr.mxu0 0.0
        %515 = vmatpush1.msra.mxu0 0.0
        %516 = vmatprep.subr.mxu0 0.0
        %517 = vmatpush1.msra.mxu0 0.0
        %518 = vmatprep.subr.mxu0 0.0
        %519 = vmatpush1.msra.mxu0 0.0
        %520 = vmatprep.subr.mxu0 0.0
        %521 = vmatpush1.msra.mxu0 0.0
        %522 = vmatprep.subr.mxu0 0.0
        %523 = vmatpush1.msra.mxu0 0.0
        %524 = vmatprep.subr.mxu0 0.0
        %525 = vmatpush1.msra.mxu0 0.0
        %526 = vmatprep.subr.mxu0 0.0
        %527 = vmatpush1.msra.mxu0 0.0
        %528 = vmatprep.subr.mxu0 0.0
        %529 = vmatpush1.msra.mxu0 0.0
        %530 = vmatprep.subr.mxu0 0.0
        %531 = vmatpush1.msra.mxu0 0.0
        %532 = vmatprep.mubr.f32.mxu0 0.0
        %533 = vmatmul.mubr.f32.gmra.mrb[0].mxu0 %v179
        %v534 = vpop.f32.mrb[0].mxu0
        %v535 = vadd.f32 0.0, %v534
        %v536 = vpop.f32.mrb[0].mxu0
        %537 = vmatprep.mubr.f32.mxu0 0.0
        %538 = vmatmul.mubr.f32.gmra.mrb[0].mxu0 %v182
        %v539 = vpop.f32.mrb[0].mxu0
        %v540 = vadd.f32 0.0, %v539
        %v541 = vpop.f32.mrb[0].mxu0
        %542 = vmatprep.mubr.f32.mxu0 0.0
        %543 = vmatmul.mubr.f32.gmra.mrb[0].mxu0 %v185
        %v544 = vpop.f32.mrb[0].mxu0
        %v545 = vadd.f32 0.0, %v544
        %v546 = vpop.f32.mrb[0].mxu0
        %547 = vmatprep.mubr.f32.mxu0 0.0
        %548 = vmatmul.mubr.f32.gmra.mrb[0].mxu0 %v188
        %v549 = vpop.f32.mrb[0].mxu0
        %v550 = vadd.f32 0.0, %v549
        %v551 = vpop.f32.mrb[0].mxu0
        %552 = vmatprep.mubr.f32.mxu0 0.0
        %553 = vmatmul.mubr.f32.gmra.mrb[0].mxu0 %v191
        %v554 = vpop.f32.mrb[0].mxu0
        %v555 = vadd.f32 0.0, %v554
        %v556 = vpop.f32.mrb[0].mxu0
        %557 = vmatprep.mubr.f32.mxu0 0.0
        %558 = vmatmul.mubr.f32.gmra.mrb[0].mxu0 %v194
        %v559 = vpop.f32.mrb[0].mxu0
        %v560 = vadd.f32 0.0, %v559
        %v561 = vpop.f32.mrb[0].mxu0
        %562 = vmatprep.mubr.f32.mxu0 0.0
        %563 = vmatmul.mubr.f32.gmra.mrb[0].mxu0 %v197
        %v564 = vpop.f32.mrb[0].mxu0
        %v565 = vadd.f32 0.0, %v564
        %v566 = vpop.f32.mrb[0].mxu0
        %567 = vmatprep.mubr.f32.mxu0 0.0
        %568 = vmatmul.mubr.f32.gmra.mrb[0].mxu0 %v200
        %v569 = vpop.f32.mrb[0].mxu0
        %v570 = vadd.f32 0.0, %v569
        %v571 = vpop.f32.mrb[0].mxu0
        %572 = vdwg.mxu0
        %573 = vmatprep.subr.mxu0 0.0
        %574 = vmatpush1.msra.mxu0 %v449
        %575 = vmatprep.subr.mxu0 0.0
        %576 = vmatpush1.msra.mxu0 %v450
        %577 = vmatprep.subr.mxu0 0.0
        %578 = vmatpush1.msra.mxu0 %v451
        %579 = vmatprep.subr.mxu0 0.0
        %580 = vmatpush1.msra.mxu0 %v452
        %581 = vmatprep.subr.mxu0 0.0
        %582 = vmatpush1.msra.mxu0 %v453
        %583 = vmatprep.subr.mxu0 0.0
        %584 = vmatpush1.msra.mxu0 %v454
        %585 = vmatprep.subr.mxu0 0.0
        %586 = vmatpush1.msra.mxu0 %v455
        %587 = vmatprep.subr.mxu0 0.0
        %588 = vmatpush1.msra.mxu0 %v456
        %589 = vmatprep.subr.mxu0 0.0
        %590 = vmatpush1.msra.mxu0 %v457
        %591 = vmatprep.subr.mxu0 0.0
        %592 = vmatpush1.msra.mxu0 %v458
        %593 = vmatprep.subr.mxu0 0.0
        %594 = vmatpush1.msra.mxu0 %v459
        %595 = vmatprep.subr.mxu0 0.0
        %596 = vmatpush1.msra.mxu0 %v460
        %597 = vmatprep.subr.mxu0 0.0
        %598 = vmatpush1.msra.mxu0 %v461
        %599 = vmatprep.subr.mxu0 0.0
        %600 = vmatpush1.msra.mxu0 %v462
        %601 = vmatprep.subr.mxu0 0.0
        %602 = vmatpush1.msra.mxu0 %v463
        %603 = vmatprep.subr.mxu0 0.0
        %604 = vmatpush1.msra.mxu0 %v464
        %605 = vmatprep.subr.mxu0 0.0
        %606 = vmatpush1.msra.mxu0 0.0
        %607 = vmatprep.subr.mxu0 0.0
        %608 = vmatpush1.msra.mxu0 0.0
        %609 = vmatprep.subr.mxu0 0.0
        %610 = vmatpush1.msra.mxu0 0.0
        %611 = vmatprep.subr.mxu0 0.0
        %612 = vmatpush1.msra.mxu0 0.0
        %613 = vmatprep.subr.mxu0 0.0
        %614 = vmatpush1.msra.mxu0 0.0
        %615 = vmatprep.subr.mxu0 0.0
        %616 = vmatpush1.msra.mxu0 0.0
        %617 = vmatprep.subr.mxu0 0.0
        %618 = vmatpush1.msra.mxu0 0.0
        %619 = vmatprep.subr.mxu0 0.0
        %620 = vmatpush1.msra.mxu0 0.0
        %621 = vmatprep.subr.mxu0 0.0
        %622 = vmatpush1.msra.mxu0 0.0
        %623 = vmatprep.subr.mxu0 0.0
        %624 = vmatpush1.msra.mxu0 0.0
        %625 = vmatprep.subr.mxu0 0.0
        %626 = vmatpush1.msra.mxu0 0.0
        %627 = vmatprep.subr.mxu0 0.0
        %628 = vmatpush1.msra.mxu0 0.0
        %629 = vmatprep.subr.mxu0 0.0
        %630 = vmatpush1.msra.mxu0 0.0
        %631 = vmatprep.subr.mxu0 0.0
        %632 = vmatpush1.msra.mxu0 0.0
        %633 = vmatprep.subr.mxu0 0.0
        %634 = vmatpush1.msra.mxu0 0.0
        %635 = vmatprep.subr.mxu0 0.0
        %636 = vmatpush1.msra.mxu0 0.0
        %637 = vmatprep.mubr.f32.mxu0 0.0
        %638 = vmatmul.mubr.f32.gmra.mrb[0].mxu0 %v441
        %v639 = vpop.f32.mrb[0].mxu0
        %v640 = vadd.f32 %v535, %v639
        %v641 = vpop.f32.mrb[0].mxu0
        %642 = vmatprep.mubr.f32.mxu0 0.0
        %643 = vmatmul.mubr.f32.gmra.mrb[0].mxu0 %v442
        %v644 = vpop.f32.mrb[0].mxu0
        %v645 = vadd.f32 %v540, %v644
        %v646 = vpop.f32.mrb[0].mxu0
        %647 = vmatprep.mubr.f32.mxu0 0.0
        %648 = vmatmul.mubr.f32.gmra.mrb[0].mxu0 %v443
        %v649 = vpop.f32.mrb[0].mxu0
        %v650 = vadd.f32 %v545, %v649
        %v651 = vpop.f32.mrb[0].mxu0
        %652 = vmatprep.mubr.f32.mxu0 0.0
        %653 = vmatmul.mubr.f32.gmra.mrb[0].mxu0 %v444
        %v654 = vpop.f32.mrb[0].mxu0
        %v655 = vadd.f32 %v550, %v654
        %v656 = vpop.f32.mrb[0].mxu0
        %657 = vmatprep.mubr.f32.mxu0 0.0
        %658 = vmatmul.mubr.f32.gmra.mrb[0].mxu0 %v445
        %v659 = vpop.f32.mrb[0].mxu0
        %v660 = vadd.f32 %v555, %v659
        %v661 = vpop.f32.mrb[0].mxu0
        %662 = vmatprep.mubr.f32.mxu0 0.0
        %663 = vmatmul.mubr.f32.gmra.mrb[0].mxu0 %v446
        %v664 = vpop.f32.mrb[0].mxu0
        %v665 = vadd.f32 %v560, %v664
        %v666 = vpop.f32.mrb[0].mxu0
        %667 = vmatprep.mubr.f32.mxu0 0.0
        %668 = vmatmul.mubr.f32.gmra.mrb[0].mxu0 %v447
        %v669 = vpop.f32.mrb[0].mxu0
        %v670 = vadd.f32 %v565, %v669
        %v671 = vpop.f32.mrb[0].mxu0
        %672 = vmatprep.mubr.f32.mxu0 0.0
        %673 = vmatmul.mubr.f32.gmra.mrb[0].mxu0 %v448
        %v674 = vpop.f32.mrb[0].mxu0
        %v675 = vadd.f32 %v570, %v674
        %v676 = vpop.f32.mrb[0].mxu0
        %677 = vdwg.mxu0
        %v678 = vlaneseq
        %v679 = vshrl.u32 %v678, 7
        %v680 = vsub.s32 0, %v679
        %v681 = vrot.slane %v467, %v680
        %v682 = vadd.f32 %v640, %v681
        %v683 = vadd.f32 %v645, %v681
        %v684 = vadd.f32 %v650, %v681
        %v685 = vadd.f32 %v655, %v681
        %v686 = vadd.f32 %v660, %v681
        %v687 = vadd.f32 %v665, %v681
        %v688 = vadd.f32 %v670, %v681
        %v689 = vadd.f32 %v675, %v681
        %vm690 = vcmask 64512
        %691 = vst.msk [vmem:[%s160] sm:$0xff] %vm690, %v682
        %692 = vst.msk [vmem:[%s160 + $0x8] sm:$0xff] %vm690, %v683
        %693 = vst.msk [vmem:[%s160 + $0x10] sm:$0xff] %vm690, %v684
        %694 = vst.msk [vmem:[%s160 + $0x18] sm:$0xff] %vm690, %v685
        %695 = vst.msk [vmem:[%s160 + $0x20] sm:$0xff] %vm690, %v686
        %696 = vst.msk [vmem:[%s160 + $0x28] sm:$0xff] %vm690, %v687
        %697 = vst.msk [vmem:[%s160 + $0x30] sm:$0xff] %vm690, %v688
        %698 = vst.msk [vmem:[%s160 + $0x38] sm:$0xff] %vm690, %v689
        %s699 = smul.u32 8, %s14
        %p700 = scmp.lt.s32.totalorder %s699, 31
        %s701 = scalar_select %p700, %s699, 31
        %s702 = smul.addr %s701, 8
        %s703 = scalar_lea.vmem %s2, %s702
        // Predicated region
        $region33: #{tpu_custom_call.1} parent=27 // pred_check
          %p704 = pneg %p79
        $region34: #{tpu_custom_call.1} parent=27 // pred_check_branch
          %706 = sbr.rel (%p704) target = $region36
        $region35: #{tpu_custom_call.1} parent=27 // pred_region
          %s707 = smul.u32 8, %s14
        $region36: #{tpu_custom_call.1} parent=27 // pred_fallthru
          _
      $region28: #{tpu_custom_call.1} parent=5 // pred_fallthru
        _
      %p708 = scmp.le.s32.totalorder 2, %s9
      // Predicated region
      $region37: #{tpu_custom_call.1} parent=5 // pred_check
        %p709 = pneg %p708
      $region38: #{tpu_custom_call.1} parent=5 // pred_check_branch
        %711 = sbr.rel (%p709) target = $region40
      $region39: #{tpu_custom_call.1} parent=5 // pred_region
        %s712 = ssub.s32 %s9, 2
        // Predicated region
        $region41: #{tpu_custom_call.1} parent=39 // pred_check
          %p713 = pneg %p85
        $region42: #{tpu_custom_call.1} parent=39 // pred_check_branch
          %715 = sbr.rel (%p713) target = $region44
        $region43: #{tpu_custom_call.1} parent=39 // pred_region
          %s716 = smul.u32 8, %s15
          %p717 = scmp.lt.s32.totalorder %s716, 31
          %s718 = scalar_select %p717, %s716, 31
          %s719 = smul.addr %s718, 8
          %s720 = scalar_lea.vmem %s2, %s719
        $region44: #{tpu_custom_call.1} parent=39 // pred_fallthru
          _
      $region40: #{tpu_custom_call.1} parent=5 // pred_fallthru
        _
    $region6: #{tpu_custom_call.1} parent=1 // loop_footer
      %s13 = sadd.s32 1, %s9
    $region7: #{tpu_custom_call.1} parent=1 // loop_footer_branch
      %8 = sbr.rel target = $region3
    $region8: #{tpu_custom_call.1} parent=1 // loop_exit
      _
    %721 = vsyncpa [#allocation3], 1
    %s722 = scalar_lea.sflag [#allocation3], 1
    %723 = vsyncpa %s722, 1

</llo_original>
